<compile_context>
chip_gen: v6e
topology: v6e:2x2x1
jax: 0.10.0
libtpu: 0.0.40
codegen_flags: <defaults>
</compile_context>

<pallas_src>
import functools
import math

import jax
import jax.numpy as jnp
from jax import lax
from jax.experimental import pallas as pl
from jax.experimental.pallas import tpu as pltpu


def _round_up(x: int, m: int) -> int:
    return ((x + m - 1) // m) * m


def _pad_to(x, target_shape):
    pads = [(0, t - s) for s, t in zip(x.shape, target_shape)]
    if any(p for _, p in pads):
        x = jnp.pad(x, pads)
    return x


def _sdpa_kernel(q_ref, k_ref, v_ref, mask_ref, ctx_ref, attn_ref, *, scale, sk_valid):
    # Blocks: q (1, TQ, dk_p), k (1, Sk_p, dk_p), v (1, Sk_p, dv_p),
    #         mask (1, TQ, Sk_p) int8, ctx (1, TQ, dv_p), attn (1, TQ, Sk_p) f32.
    q = q_ref[0] * scale                      # fold 1/sqrt(d_k) into Q (TQ x d_k mults)
    k = k_ref[0]                              # (Sk_p, dk_p)
    v = v_ref[0]                              # (Sk_p, dv_p)
    m = mask_ref[0].astype(jnp.float32)       # int8 {0,1} -> f32

    # scores = (Q * scale) @ K^T via transposed contraction (no explicit K transpose).
    scores = lax.dot_general(
        q, k, (((1,), (1,)), ((), ())), preferred_element_type=jnp.float32)

    # masked_fill_(attn_mask, -1e9)
    scores = jnp.where(m != 0.0, jnp.float32(-1e9), scores)

    # Padded key columns (S_k rounded up to a multiple of 128) get -inf so they carry
    # exactly zero weight, even if every real key of a row is masked.
    if sk_valid < scores.shape[-1]:
        col = lax.broadcasted_iota(jnp.int32, scores.shape, 1)
        scores = jnp.where(col >= sk_valid, -jnp.inf, scores)

    # Numerically-stable softmax over the key axis.
    mx = jnp.max(scores, axis=-1, keepdims=True)
    e = jnp.exp(scores - mx)
    denom = jnp.sum(e, axis=-1, keepdims=True)
    inv = pl.reciprocal(denom, approx=True)   # EUP slot (otherwise idle)
    inv = inv * (2.0 - denom * inv)           # one Newton step -> ~f32-exact reciprocal
    attn = e * inv

    # context = attn @ V
    ctx = jnp.dot(attn.astype(v.dtype), v, preferred_element_type=jnp.float32)

    attn_ref[0] = attn.astype(attn_ref.dtype)
    ctx_ref[0] = ctx.astype(ctx_ref.dtype)


def scaled_dot_product_attention(Q, K, V, attn_mask, d_k):
    """Pallas TPU implementation of the PyTorch ScaledDotProductAttention.forward.

    Q: [B, H, S_q, d_k], K: [B, H, S_k, d_k], V: [B, H, S_k, d_v],
    attn_mask: [B, H, S_q, S_k] bool (True == masked out with -1e9).
    Returns (context [B, H, S_q, d_v], attn [B, H, S_q, S_k]).
    """
    B, H, Sq, dk = Q.shape
    Sk = K.shape[2]
    dv = V.shape[3]
    BH = B * H

    # ---- padded / tiled geometry --------------------------------------------
    dk_p = _round_up(dk, 128)          # MXU-friendly contraction width
    dv_p = _round_up(dv, 128)          # lane-dense ctx output
    Sk_p = _round_up(Sk, 128)          # lane-dense attn output / score lanes

    # q-tile: up to 256 rows; shrink so the double-buffered streamed tiles
    # (q, mask, attn, ctx) stay inside a v7x-sized VMEM budget for long S_k.
    TQ_MAX = 256
    STREAM_BUDGET = 16 * 1024 * 1024   # bytes for the double-buffered per-step tiles
    Sq8 = _round_up(Sq, 8)
    if Sq8 <= TQ_MAX:
        TQ = Sq8
    else:
        bytes_per_q_row = Sk_p * (4 + 1) + (dk_p + dv_p) * 4
        tq_fit = (STREAM_BUDGET // (2 * bytes_per_q_row)) // 8 * 8
        TQ = int(max(8, min(TQ_MAX, tq_fit)))
    Sq_p = _round_up(Sq, TQ)
    num_q_tiles = Sq_p // TQ

    # ---- reshape + zero-pad inputs (zero padding does not change Q K^T) ------
    q = _pad_to(Q.reshape(BH, Sq, dk), (BH, Sq_p, dk_p))
    k = _pad_to(K.reshape(BH, Sk, dk), (BH, Sk_p, dk_p))
    v = _pad_to(V.reshape(BH, Sk, dv), (BH, Sk_p, dv_p))
    mask = _pad_to(attn_mask.reshape(BH, Sq, Sk).astype(jnp.int8), (BH, Sq_p, Sk_p))

    scale = 1.0 / math.sqrt(float(d_k))
    kernel = functools.partial(_sdpa_kernel, scale=scale, sk_valid=Sk)

    ctx_p, attn_p = pl.pallas_call(
        kernel,
        out_shape=(
            jax.ShapeDtypeStruct((BH, Sq_p, dv_p), Q.dtype),
            jax.ShapeDtypeStruct((BH, Sq_p, Sk_p), jnp.float32),
        ),
        grid_spec=pltpu.PrefetchScalarGridSpec(
            num_scalar_prefetch=0,
            grid=(BH, num_q_tiles),
            in_specs=[
                pl.BlockSpec((1, TQ, dk_p), lambda b, qi: (b, qi, 0)),
                pl.BlockSpec((1, Sk_p, dk_p), lambda b, qi: (b, 0, 0)),  # resident per head
                pl.BlockSpec((1, Sk_p, dv_p), lambda b, qi: (b, 0, 0)),  # resident per head
                pl.BlockSpec((1, TQ, Sk_p), lambda b, qi: (b, qi, 0)),
            ],
            out_specs=[
                pl.BlockSpec((1, TQ, dv_p), lambda b, qi: (b, qi, 0)),
                pl.BlockSpec((1, TQ, Sk_p), lambda b, qi: (b, qi, 0)),
            ],
        ),
        compiler_params=pltpu.CompilerParams(
            dimension_semantics=("parallel", "parallel"),
            vmem_limit_bytes=48 * 1024 * 1024,   # explicit, fits v7x's 64 MiB VMEM
        ),
    )(q, k, v, mask)

    context = ctx_p[:, :Sq, :dv].reshape(B, H, Sq, dv)
    attn = attn_p[:, :Sq, :Sk].reshape(B, H, Sq, Sk)
    return context, attn


def _reference(Q, K, V, attn_mask, d_k):
    scores = jnp.einsum("bhqd,bhkd->bhqk", Q, K) / jnp.sqrt(jnp.float32(d_k))
    scores = jnp.where(attn_mask, jnp.float32(-1e9), scores)
    attn = jax.nn.softmax(scores, axis=-1)
    context = jnp.einsum("bhqk,bhkd->bhqd", attn, V)
    return context, attn


if __name__ == "__main__":
    # Small shapes consistent with the forward signature.
    B, H = 2, 2
    S_q = S_k = 8
    d_k = d_v = 16
    # Unused-by-forward hyperparams (kept for signature parity with the module):
    d_model, n_layers, n_heads, d_ff = 32, 2, H, 64

    key = jax.random.PRNGKey(0)
    kq, kk, kv, km = jax.random.split(key, 4)
    Q = jax.random.normal(kq, (B, H, S_q, d_k), dtype=jnp.float32)
    K = jax.random.normal(kk, (B, H, S_k, d_k), dtype=jnp.float32)
    V = jax.random.normal(kv, (B, H, S_k, d_v), dtype=jnp.float32)
    # Deterministic mask: mask out ~25% of positions (True == masked).
    attn_mask = jax.random.bernoulli(km, p=0.25, shape=(B, H, S_q, S_k))

    context, attn = scaled_dot_product_attention(Q, K, V, attn_mask, d_k)
    jax.block_until_ready((context, attn))

    ref_ctx, ref_attn = _reference(Q, K, V, attn_mask, d_k)
    assert jnp.allclose(context, ref_ctx, atol=1e-4, rtol=1e-4)
    assert jnp.allclose(attn, ref_attn, atol=5e-5, rtol=5e-5)

    print("KERNEL_OK")
</pallas_src>

<mosaic_0001>
module attributes {stable_mosaic.version = 11 : i64} {
  func.func @_sdpa_kernel(%arg0: i32, %arg1: i32, %arg2: memref<1x8x128xf32, #tpu.memory_space<vmem>>, %arg3: memref<1x128x128xf32, #tpu.memory_space<vmem>>, %arg4: memref<1x128x128xf32, #tpu.memory_space<vmem>>, %arg5: memref<1x8x128xi8, #tpu.memory_space<vmem>>, %arg6: memref<1x8x128xf32, #tpu.memory_space<vmem>>, %arg7: memref<1x8x128xf32, #tpu.memory_space<vmem>>) attributes {dimension_semantics = [#tpu.dimension_semantics<parallel>, #tpu.dimension_semantics<parallel>], iteration_bounds = array<i64: 4, 1>, scalar_prefetch = 0 : i64, scratch_operands = 0 : i64, tpu.core_type = #tpu.core_type<tc>, window_params = [{transform_indices = @transform_0, window_bounds = array<i64: 1, 8, 128>}, {transform_indices = @transform_1, window_bounds = array<i64: 1, 128, 128>}, {transform_indices = @transform_2, window_bounds = array<i64: 1, 128, 128>}, {transform_indices = @transform_3, window_bounds = array<i64: 1, 8, 128>}, {transform_indices = @transform_4, window_bounds = array<i64: 1, 8, 128>}, {transform_indices = @transform_5, window_bounds = array<i64: 1, 8, 128>}]} {
    %c0 = arith.constant 0 : index
    %c0_0 = arith.constant 0 : index
    %c0_1 = arith.constant 0 : index
    %0 = vector.load %arg2[%c0, %c0_0, %c0_1] : memref<1x8x128xf32, #tpu.memory_space<vmem>>, vector<1x8x128xf32>
    %1 = vector.shape_cast %0 : vector<1x8x128xf32> to vector<8x128xf32>
    %cst = arith.constant 2.500000e-01 : f32
    %2 = vector.broadcast %cst : f32 to vector<8x128xf32>
    %3 = arith.mulf %1, %2 : vector<8x128xf32>
    %c0_2 = arith.constant 0 : index
    %c0_3 = arith.constant 0 : index
    %c0_4 = arith.constant 0 : index
    %4 = vector.load %arg3[%c0_2, %c0_3, %c0_4] : memref<1x128x128xf32, #tpu.memory_space<vmem>>, vector<1x128x128xf32>
    %5 = vector.shape_cast %4 : vector<1x128x128xf32> to vector<128x128xf32>
    %c0_5 = arith.constant 0 : index
    %c0_6 = arith.constant 0 : index
    %c0_7 = arith.constant 0 : index
    %6 = vector.load %arg4[%c0_5, %c0_6, %c0_7] : memref<1x128x128xf32, #tpu.memory_space<vmem>>, vector<1x128x128xf32>
    %7 = vector.shape_cast %6 : vector<1x128x128xf32> to vector<128x128xf32>
    %c0_8 = arith.constant 0 : index
    %c0_9 = arith.constant 0 : index
    %c0_10 = arith.constant 0 : index
    %8 = vector.load %arg5[%c0_8, %c0_9, %c0_10] : memref<1x8x128xi8, #tpu.memory_space<vmem>>, vector<1x8x128xi8>
    %9 = vector.shape_cast %8 : vector<1x8x128xi8> to vector<8x128xi8>
    %10 = arith.sitofp %9 : vector<8x128xi8> to vector<8x128xf32>
    %cst_11 = arith.constant dense<0.000000e+00> : vector<8x128xf32>
    %11 = tpu.matmul %3, %5, %cst_11 {dimension_numbers = #tpu.dot_dimension_numbers<[1], [1], [0], [0], [0, 0, 1, 0], [], []>} : vector<8x128xf32>, vector<128x128xf32>, vector<8x128xf32> -> vector<8x128xf32>
    %cst_12 = arith.constant 0.000000e+00 : f32
    %12 = vector.broadcast %cst_12 : f32 to vector<8x128xf32>
    %13 = arith.cmpf one, %10, %12 : vector<8x128xf32>
    %cst_13 = arith.constant -1.000000e+09 : f32
    %14 = vector.broadcast %cst_13 : f32 to vector<8x128xf32>
    %15 = arith.select %13, %14, %11 : vector<8x128xi1>, vector<8x128xf32>
    %16 = tpu.iota {dimensions = array<i32: 1>} : vector<8x128xi32>
    %c8_i32 = arith.constant 8 : i32
    %17 = vector.broadcast %c8_i32 : i32 to vector<8x128xi32>
    %18 = arith.cmpi sge, %16, %17 : vector<8x128xi32>
    %cst_14 = arith.constant 0xFF800000 : f32
    %19 = vector.broadcast %cst_14 : f32 to vector<8x128xf32>
    %20 = arith.select %18, %19, %15 : vector<8x128xi1>, vector<8x128xf32>
    %cst_15 = arith.constant dense<0xFF800000> : vector<8xf32>
    %21 = vector.multi_reduction <maximumf>, %20, %cst_15 [1] : vector<8x128xf32> to vector<8xf32>
    %22 = vector.shape_cast %21 : vector<8xf32> to vector<8x1xf32>
    %23 = vector.broadcast %22 : vector<8x1xf32> to vector<8x128xf32>
    %24 = arith.subf %20, %23 : vector<8x128xf32>
    %25 = math.exp %24 : vector<8x128xf32>
    %cst_16 = arith.constant dense<0.000000e+00> : vector<8xf32>
    %26 = vector.multi_reduction <add>, %25, %cst_16 [1] : vector<8x128xf32> to vector<8xf32>
    %27 = vector.shape_cast %26 : vector<8xf32> to vector<8x1xf32>
    %28 = tpu.reciprocal %27 {approx = true} : vector<8x1xf32> -> vector<8x1xf32>
    %29 = arith.mulf %27, %28 : vector<8x1xf32>
    %cst_17 = arith.constant 2.000000e+00 : f32
    %30 = vector.broadcast %cst_17 : f32 to vector<8x1xf32>
    %31 = arith.subf %30, %29 : vector<8x1xf32>
    %32 = arith.mulf %28, %31 : vector<8x1xf32>
    %33 = vector.broadcast %32 : vector<8x1xf32> to vector<8x128xf32>
    %34 = arith.mulf %25, %33 : vector<8x128xf32>
    %cst_18 = arith.constant dense<0.000000e+00> : vector<8x128xf32>
    %35 = tpu.matmul %34, %7, %cst_18 {dimension_numbers = #tpu.dot_dimension_numbers<[1], [0], [0], [1], [0, 0, 1, 1], [], []>} : vector<8x128xf32>, vector<128x128xf32>, vector<8x128xf32> -> vector<8x128xf32>
    %c0_19 = arith.constant 0 : index
    %c0_20 = arith.constant 0 : index
    %c0_21 = arith.constant 0 : index
    %36 = vector.load %arg7[%c0_19, %c0_20, %c0_21] : memref<1x8x128xf32, #tpu.memory_space<vmem>>, vector<1x8x128xf32>
    %37 = vector.shape_cast %36 : vector<1x8x128xf32> to vector<8x128xf32>
    %38 = vector.shape_cast %34 : vector<8x128xf32> to vector<1x8x128xf32>
    tpu.vector_store %arg7[%c0_19, %c0_20, %c0_21], %38 {strides = array<i32>} : memref<1x8x128xf32, #tpu.memory_space<vmem>>, vector<1x8x128xf32>,
    %c0_22 = arith.constant 0 : index
    %c0_23 = arith.constant 0 : index
    %c0_24 = arith.constant 0 : index
    %39 = vector.load %arg6[%c0_22, %c0_23, %c0_24] : memref<1x8x128xf32, #tpu.memory_space<vmem>>, vector<1x8x128xf32>
    %40 = vector.shape_cast %39 : vector<1x8x128xf32> to vector<8x128xf32>
    %41 = vector.shape_cast %35 : vector<8x128xf32> to vector<1x8x128xf32>
    tpu.vector_store %arg6[%c0_22, %c0_23, %c0_24], %41 {strides = array<i32>} : memref<1x8x128xf32, #tpu.memory_space<vmem>>, vector<1x8x128xf32>,
    return
  }
  func.func @transform_0(%arg0: i32, %arg1: i32) -> (i32, i32, i32) {
    %c0_i32 = arith.constant 0 : i32
    %c0_i32_0 = arith.constant 0 : i32
    return %arg0, %arg1, %c0_i32 : i32, i32, i32
  }
  func.func @transform_1(%arg0: i32, %arg1: i32) -> (i32, i32, i32) {
    %c0_i32 = arith.constant 0 : i32
    %c0_i32_0 = arith.constant 0 : i32
    %c0_i32_1 = arith.constant 0 : i32
    return %arg0, %c0_i32, %c0_i32_0 : i32, i32, i32
  }
  func.func @transform_2(%arg0: i32, %arg1: i32) -> (i32, i32, i32) {
    %c0_i32 = arith.constant 0 : i32
    %c0_i32_0 = arith.constant 0 : i32
    %c0_i32_1 = arith.constant 0 : i32
    return %arg0, %c0_i32, %c0_i32_0 : i32, i32, i32
  }
  func.func @transform_3(%arg0: i32, %arg1: i32) -> (i32, i32, i32) {
    %c0_i32 = arith.constant 0 : i32
    %c0_i32_0 = arith.constant 0 : i32
    return %arg0, %arg1, %c0_i32 : i32, i32, i32
  }
  func.func @transform_4(%arg0: i32, %arg1: i32) -> (i32, i32, i32) {
    %c0_i32 = arith.constant 0 : i32
    %c0_i32_0 = arith.constant 0 : i32
    return %arg0, %arg1, %c0_i32 : i32, i32, i32
  }
  func.func @transform_5(%arg0: i32, %arg1: i32) -> (i32, i32, i32) {
    %c0_i32 = arith.constant 0 : i32
    %c0_i32_0 = arith.constant 0 : i32
    return %arg0, %arg1, %c0_i32 : i32, i32, i32
  }
}

</mosaic_0001>

<llo_original>
// kernel: tpu_custom_call.1
$region0: #{tpu_custom_call.1}
  #allocation0 [shape = 'u32[]', space=smem, size = 0x4, offset = 0x4, fixed_abs, tag = 'smem constant byte address 0x4 - core index']
  #allocation1 [shape = 'u32[144,128]{1,0:T(1,128)}', space=vmem, size = 0x12000, scoped, tag = 'internal scratch']
  %s0 = inlined_call_operand.hbm [shape: f32[4,8,128], index: 0, kind: input, shape index: {}]
  %s1 = inlined_call_operand.hbm [shape: f32[4,128,128], index: 1, kind: input, shape index: {}]
  %s2 = inlined_call_operand.hbm [shape: f32[4,128,128], index: 2, kind: input, shape index: {}]
  %s3 = inlined_call_operand.hbm [shape: s8[4,8,128], index: 3, kind: input, shape index: {}]
  %s4 = inlined_call_operand.hbm [shape: f32[4,8,128], index: 4, kind: output, shape index: {0}]
  %s5 = inlined_call_operand.hbm [shape: f32[4,8,128], index: 5, kind: output, shape index: {1}]
  %6 = xla_tuple %s4, %s5
  %s7 = sld [smem:[#allocation0]]
  $region73: #{tpu_custom_call.1} parent=0
    _
  %s9 = ssub.s32 1, %s7
  %s10 = scalar_select 0, %s9, %s7
  $region1: #{tpu_custom_call.1} parent=0
    #allocation2 [shape = 'u8[8192]{0}', space=vmem, size = 0x2000, scoped, tag = 'input window, operand 0']
    #allocation3 [shape = 's32[2]{0}', space=sflag, size = 0x8, scoped, tag = 'scoped memory for tpu_custom_call.1']
    #allocation4 [shape = 's32[2]{0}', space=sflag, size = 0x8, scoped, tag = 'scoped memory for tpu_custom_call.1']
    #allocation5 [shape = 'u8[131072]{0}', space=vmem, size = 0x20000, scoped, tag = 'input window, operand 1']
    #allocation6 [shape = 's32[2]{0}', space=sflag, size = 0x8, scoped, tag = 'scoped memory for tpu_custom_call.1']
    #allocation7 [shape = 'u8[131072]{0}', space=vmem, size = 0x20000, scoped, tag = 'input window, operand 2']
    #allocation8 [shape = 'u8[2048]{0}', space=vmem, size = 0x800, scoped, tag = 'input window, operand 3']
    #allocation9 [shape = 's32[2]{0}', space=sflag, size = 0x8, scoped, tag = 'scoped memory for tpu_custom_call.1']
    #allocation10 [shape = 'u8[8192]{0}', space=vmem, size = 0x2000, scoped, tag = 'output window, operand 0']
    #allocation11 [shape = 'u8[8192]{0}', space=vmem, size = 0x2000, scoped, tag = 'output window, operand 1']
    #allocation12 [shape = 's32[2]{0}', space=sflag, size = 0x8, scoped, tag = 'scoped memory for tpu_custom_call.1']
    %11 = vsyncpa [#allocation3], 0
    %s12 = scalar_lea.sflag [#allocation3], 1
    %13 = vsyncpa %s12, 0
    %14 = vsyncpa [#allocation6], 0
    %s15 = scalar_lea.sflag [#allocation6], 1
    %16 = vsyncpa %s15, 0
    %17 = vsyncpa [#allocation9], 0
    %s18 = scalar_lea.sflag [#allocation9], 1
    %19 = vsyncpa %s18, 0
    %20 = vsyncpa [#allocation4], 0
    %s21 = scalar_lea.sflag [#allocation4], 1
    %22 = vsyncpa %s21, 0
    %23 = vsyncpa [#allocation12], 0
    %s24 = scalar_lea.sflag [#allocation12], 1
    %25 = vsyncpa %s24, 0
    loop: start=0, step=1, limit=6
    $region2: #{tpu_custom_call.1} parent=1 // loop_pre_header
      _
    $region3: #{tpu_custom_call.1} parent=1 // loop_header
      %s27 = sphi 0, %s31
      %p28 = scmp.ge.s32.totalorder %s27, 6
      %s34 = sphi 0, %s46
      %s35 = sphi 0, %s42
      %s36 = sphi 0, %s34
      %s37 = sphi 0, %s35
      %s38 = sphi 0, %s36
      %s39 = sphi 0, %s37
      %s51 = sphi 0, %s53
      %s54 = sphi 0, %s51
      %s55 = sphi 0, %s54
      %s71 = sphi 0, %s55
      %s77 = sphi 0, %s79
      %s80 = sphi 0, %s77
      %s81 = sphi 0, %s80
      %s97 = sphi 0, %s81
      %s103 = sphi 0, %s105
      %s106 = sphi 0, %s103
      %s107 = sphi 0, %s106
      %s123 = sphi 0, %s107
      %s131 = sphi 0, %s133
      %s134 = sphi 0, %s131
      %s135 = sphi 0, %s134
      %s151 = sphi 0, %s135
      %s159 = sphi 0, %s161
      %s162 = sphi 0, %s159
      %s163 = sphi 0, %s162
      %s179 = sphi 0, %s163
      %s187 = sphi 0, %s189
      %s190 = sphi 0, %s187
      %s191 = sphi 0, %s190
      %s207 = sphi 0, %s191
    $region4: #{tpu_custom_call.1} parent=1 // loop_header_branch
      %30 = sbr.rel (%p28) target = $region8
    $region5: #{tpu_custom_call.1} parent=1 // loop_body
      %s32 = ssub.s32 %s27, 1
      %s33 = ssub.s32 %s27, 2
      %s40 = sadd.s32 1, %s35
      %p41 = scmp.ge.s32.totalorder %s40, 1
      %s42 = scalar_select %p41, 0, %s40
      %s43 = sadd.s32 1, %s34
      %s44 = scalar_select %p41, %s43, %s34
      %p45 = scmp.ge.s32.totalorder %s44, 4
      %s46 = scalar_select %p45, 0, %s44
      %s47 = ssub.s32 %s34, %s46
      %s48 = ssub.s32 %s35, %s42
      %s49 = sor.u32 %s47, %s48
      %p50 = scmp.eq.s32.totalorder %s49, 0
      %s52 = sadd.s32 %s51, 1
      %s53 = scalar_select %p50, %s51, %s52
      %p56 = pneg %p50
      %p57 = scmp.eq.s32.totalorder %s27, 3
      %p58 = por %p56, %p57
      %p59 = scmp.ne.s32.totalorder %s51, %s54
      %p60 = scmp.eq.s32.totalorder %s27, 0
      %p61 = por %p59, %p60
      %p62 = scmp.ne.s32.totalorder %s51, %s54
      %p63 = scmp.eq.s32.totalorder %s32, 3
      %p64 = por %p62, %p63
      %p65 = scmp.ne.s32.totalorder %s54, %s55
      %p66 = scmp.eq.s32.totalorder %s32, 0
      %p67 = por %p65, %p66
      %p68 = scmp.ne.s32.totalorder %s54, %s55
      %p69 = scmp.eq.s32.totalorder %s33, 3
      %p70 = por %p68, %p69
      %p72 = scmp.ne.s32.totalorder %s55, %s71
      %p73 = scmp.eq.s32.totalorder %s33, 0
      %p74 = por %p72, %p73
      %s75 = ssub.s32 %s34, %s46
      %p76 = scmp.eq.s32.totalorder %s75, 0
      %s78 = sadd.s32 %s77, 1
      %s79 = scalar_select %p76, %s77, %s78
      %p82 = pneg %p76
      %p83 = scmp.eq.s32.totalorder %s27, 3
      %p84 = por %p82, %p83
      %p85 = scmp.ne.s32.totalorder %s77, %s80
      %p86 = scmp.eq.s32.totalorder %s27, 0
      %p87 = por %p85, %p86
      %p88 = scmp.ne.s32.totalorder %s77, %s80
      %p89 = scmp.eq.s32.totalorder %s32, 3
      %p90 = por %p88, %p89
      %p91 = scmp.ne.s32.totalorder %s80, %s81
      %p92 = scmp.eq.s32.totalorder %s32, 0
      %p93 = por %p91, %p92
      %p94 = scmp.ne.s32.totalorder %s80, %s81
      %p95 = scmp.eq.s32.totalorder %s33, 3
      %p96 = por %p94, %p95
      %p98 = scmp.ne.s32.totalorder %s81, %s97
      %p99 = scmp.eq.s32.totalorder %s33, 0
      %p100 = por %p98, %p99
      %s101 = ssub.s32 %s34, %s46
      %p102 = scmp.eq.s32.totalorder %s101, 0
      %s104 = sadd.s32 %s103, 1
      %s105 = scalar_select %p102, %s103, %s104
      %p108 = pneg %p102
      %p109 = scmp.eq.s32.totalorder %s27, 3
      %p110 = por %p108, %p109
      %p111 = scmp.ne.s32.totalorder %s103, %s106
      %p112 = scmp.eq.s32.totalorder %s27, 0
      %p113 = por %p111, %p112
      %p114 = scmp.ne.s32.totalorder %s103, %s106
      %p115 = scmp.eq.s32.totalorder %s32, 3
      %p116 = por %p114, %p115
      %p117 = scmp.ne.s32.totalorder %s106, %s107
      %p118 = scmp.eq.s32.totalorder %s32, 0
      %p119 = por %p117, %p118
      %p120 = scmp.ne.s32.totalorder %s106, %s107
      %p121 = scmp.eq.s32.totalorder %s33, 3
      %p122 = por %p120, %p121
      %p124 = scmp.ne.s32.totalorder %s107, %s123
      %p125 = scmp.eq.s32.totalorder %s33, 0
      %p126 = por %p124, %p125
      %s127 = ssub.s32 %s34, %s46
      %s128 = ssub.s32 %s35, %s42
      %s129 = sor.u32 %s127, %s128
      %p130 = scmp.eq.s32.totalorder %s129, 0
      %s132 = sadd.s32 %s131, 1
      %s133 = scalar_select %p130, %s131, %s132
      %p136 = pneg %p130
      %p137 = scmp.eq.s32.totalorder %s27, 3
      %p138 = por %p136, %p137
      %p139 = scmp.ne.s32.totalorder %s131, %s134
      %p140 = scmp.eq.s32.totalorder %s27, 0
      %p141 = por %p139, %p140
      %p142 = scmp.ne.s32.totalorder %s131, %s134
      %p143 = scmp.eq.s32.totalorder %s32, 3
      %p144 = por %p142, %p143
      %p145 = scmp.ne.s32.totalorder %s134, %s135
      %p146 = scmp.eq.s32.totalorder %s32, 0
      %p147 = por %p145, %p146
      %p148 = scmp.ne.s32.totalorder %s134, %s135
      %p149 = scmp.eq.s32.totalorder %s33, 3
      %p150 = por %p148, %p149
      %p152 = scmp.ne.s32.totalorder %s135, %s151
      %p153 = scmp.eq.s32.totalorder %s33, 0
      %p154 = por %p152, %p153
      %s155 = ssub.s32 %s34, %s46
      %s156 = ssub.s32 %s35, %s42
      %s157 = sor.u32 %s155, %s156
      %p158 = scmp.eq.s32.totalorder %s157, 0
      %s160 = sadd.s32 %s159, 1
      %s161 = scalar_select %p158, %s159, %s160
      %p164 = pneg %p158
      %p165 = scmp.eq.s32.totalorder %s27, 3
      %p166 = por %p164, %p165
      %p167 = scmp.ne.s32.totalorder %s159, %s162
      %p168 = scmp.eq.s32.totalorder %s27, 0
      %p169 = por %p167, %p168
      %p170 = scmp.ne.s32.totalorder %s159, %s162
      %p171 = scmp.eq.s32.totalorder %s32, 3
      %p172 = por %p170, %p171
      %p173 = scmp.ne.s32.totalorder %s162, %s163
      %p174 = scmp.eq.s32.totalorder %s32, 0
      %p175 = por %p173, %p174
      %p176 = scmp.ne.s32.totalorder %s162, %s163
      %p177 = scmp.eq.s32.totalorder %s33, 3
      %p178 = por %p176, %p177
      %p180 = scmp.ne.s32.totalorder %s163, %s179
      %p181 = scmp.eq.s32.totalorder %s33, 0
      %p182 = por %p180, %p181
      %s183 = ssub.s32 %s34, %s46
      %s184 = ssub.s32 %s35, %s42
      %s185 = sor.u32 %s183, %s184
      %p186 = scmp.eq.s32.totalorder %s185, 0
      %s188 = sadd.s32 %s187, 1
      %s189 = scalar_select %p186, %s187, %s188
      %p192 = pneg %p186
      %p193 = scmp.eq.s32.totalorder %s27, 3
      %p194 = por %p192, %p193
      %p195 = scmp.ne.s32.totalorder %s187, %s190
      %p196 = scmp.eq.s32.totalorder %s27, 0
      %p197 = por %p195, %p196
      %p198 = scmp.ne.s32.totalorder %s187, %s190
      %p199 = scmp.eq.s32.totalorder %s32, 3
      %p200 = por %p198, %p199
      %p201 = scmp.ne.s32.totalorder %s190, %s191
      %p202 = scmp.eq.s32.totalorder %s32, 0
      %p203 = por %p201, %p202
      %p204 = scmp.ne.s32.totalorder %s190, %s191
      %p205 = scmp.eq.s32.totalorder %s33, 3
      %p206 = por %p204, %p205
      %p208 = scmp.ne.s32.totalorder %s191, %s207
      %p209 = scmp.eq.s32.totalorder %s33, 0
      %p210 = por %p208, %p209
      %p211 = scmp.le.s32.totalorder 1, %s27
      %p212 = scmp.lt.s32.totalorder %s27, 5
      %p213 = pnand %p211, %p212
      %p214 = pneg %p213
      // Predicated region
      $region9: #{tpu_custom_call.1} parent=5 // pred_check
        _
      $region10: #{tpu_custom_call.1} parent=5 // pred_check_branch
        %216 = sbr.rel (%p213) target = $region12
      $region11: #{tpu_custom_call.1} parent=5 // pred_region
        %s217 = ssub.s32 %s27, 1
      $region12: #{tpu_custom_call.1} parent=5 // pred_fallthru
        _
      %p218 = scmp.lt.s32.totalorder %s27, 4
      // Predicated region
      $region13: #{tpu_custom_call.1} parent=5 // pred_check
        %p219 = pneg %p218
      $region14: #{tpu_custom_call.1} parent=5 // pred_check_branch
        %221 = sbr.rel (%p219) target = $region16
      $region15: #{tpu_custom_call.1} parent=5 // pred_region
        // Predicated region
        $region17: #{tpu_custom_call.1} parent=15 // pred_check
          %p222 = pneg %p61
        $region18: #{tpu_custom_call.1} parent=15 // pred_check_branch
          %224 = sbr.rel (%p222) target = $region20
        $region19: #{tpu_custom_call.1} parent=15 // pred_region
          %s225 = sand.u32 %s51, 1
          %s226 = scalar_lea.sflag [#allocation3], %s225
          %s227 = sand.u32 %s51, 1
          %s228 = smul.addr %s227, 8
          %s229 = scalar_lea.vmem [#allocation2], %s228
          %s231 = ssub.s32 128, 128
          %232 = vsyncadd %s226, %s231
          %s233 = sadd.s32 %s35, %s34
          %s234 = smul.addr %s233, 128
          %s235 = scalar_lea.hbm %s0, %s234
          %s237 = sshll.u32 %s229, 4
          %s238 = int_to_ptr.vmem [resolvable:$true] %s237
          %240 = dma.hbm_to_vmem [thread:$0]  %s235, 128, %s238, %s226
        $region20: #{tpu_custom_call.1} parent=15 // pred_fallthru
          _
        // Predicated region
        $region21: #{tpu_custom_call.1} parent=15 // pred_check
          %p241 = pneg %p87
        $region22: #{tpu_custom_call.1} parent=15 // pred_check_branch
          %243 = sbr.rel (%p241) target = $region24
        $region23: #{tpu_custom_call.1} parent=15 // pred_region
          %s244 = sand.u32 %s27, 1
          %s245 = scalar_lea.sflag [#allocation6], %s244
          %s246 = sand.u32 %s77, 1
          %s247 = smul.addr %s246, 128
          %s248 = scalar_lea.vmem [#allocation5], %s247
          %s250 = ssub.s32 2048, 2048
          %251 = vsyncadd %s245, %s250
          %s252 = smul.addr %s34, 16
          %s253 = smul.addr %s252, 128
          %s254 = scalar_lea.hbm %s1, %s253
          %s255 = sshll.u32 %s248, 4
          %s256 = int_to_ptr.vmem [resolvable:$true] %s255
          %261 = dma.hbm_to_vmem [thread:$0]  %s254, 2048, %s256, %s245, 128, 128, 8
        $region24: #{tpu_custom_call.1} parent=15 // pred_fallthru
          _
        // Predicated region
        $region25: #{tpu_custom_call.1} parent=15 // pred_check
          %p262 = pneg %p113
        $region26: #{tpu_custom_call.1} parent=15 // pred_check_branch
          %264 = sbr.rel (%p262) target = $region28
        $region27: #{tpu_custom_call.1} parent=15 // pred_region
          %s265 = sand.u32 %s27, 1
          %s266 = scalar_lea.sflag [#allocation6], %s265
          %s267 = sand.u32 %s103, 1
          %s268 = smul.addr %s267, 128
          %s269 = scalar_lea.vmem [#allocation7], %s268
          %s271 = ssub.s32 2048, 2048
          %272 = vsyncadd %s266, %s271
          %s273 = smul.addr %s34, 16
          %s274 = smul.addr %s273, 128
          %s275 = scalar_lea.hbm %s2, %s274
          %s276 = sshll.u32 %s269, 4
          %s277 = int_to_ptr.vmem [resolvable:$true] %s276
          %282 = dma.hbm_to_vmem [thread:$0]  %s275, 2048, %s277, %s266, 128, 128, 8
        $region28: #{tpu_custom_call.1} parent=15 // pred_fallthru
          _
        // Predicated region
        $region29: #{tpu_custom_call.1} parent=15 // pred_check
          %p283 = pneg %p141
        $region30: #{tpu_custom_call.1} parent=15 // pred_check_branch
          %285 = sbr.rel (%p283) target = $region32
        $region31: #{tpu_custom_call.1} parent=15 // pred_region
          %s286 = sand.u32 %s131, 1
          %s287 = scalar_lea.sflag [#allocation9], %s286
          %s288 = sand.u32 %s131, 1
          %s289 = smul.addr %s288, 2
          %s290 = scalar_lea.vmem [#allocation8], %s289
          %s292 = ssub.s32 32, 32
          %293 = vsyncadd %s287, %s292
          %s294 = sadd.s32 %s35, %s34
          %s295 = smul.addr %s294, 32
          %s296 = scalar_lea.hbm %s3, %s295
          %s298 = sshll.u32 %s290, 4
          %s299 = int_to_ptr.vmem [resolvable:$true] %s298
          %301 = dma.hbm_to_vmem [thread:$0]  %s296, 32, %s299, %s287
        $region32: #{tpu_custom_call.1} parent=15 // pred_fallthru
          _
      $region16: #{tpu_custom_call.1} parent=5 // pred_fallthru
        _
      %p302 = scmp.le.s32.totalorder 1, %s27
      %p303 = scmp.lt.s32.totalorder %s27, 5
      %p304 = pnand %p302, %p303
      %p305 = pneg %p304
      // Predicated region
      $region33: #{tpu_custom_call.1} parent=5 // pred_check
        _
      $region34: #{tpu_custom_call.1} parent=5 // pred_check_branch
        %307 = sbr.rel (%p304) target = $region36
      $region35: #{tpu_custom_call.1} parent=5 // pred_region
        %s308 = ssub.s32 %s27, 1
        %s309 = sand.u32 %s54, 1
        %s310 = scalar_lea.sflag [#allocation3], %s309
        %s311 = sand.u32 %s54, 1
        %s312 = smul.addr %s311, 8
        %s313 = scalar_lea.vmem [#allocation2], %s312
        // Predicated region
        $region37: #{tpu_custom_call.1} parent=35 // pred_check
          %p314 = pneg %p67
        $region38: #{tpu_custom_call.1} parent=35 // pred_check_branch
          %316 = sbr.rel (%p314) target = $region40
        $region39: #{tpu_custom_call.1} parent=35 // pred_region
          %317 = dma.done %s310, 128
        $region40: #{tpu_custom_call.1} parent=35 // pred_fallthru
          _
        %s318 = sand.u32 %s32, 1
        %s319 = scalar_lea.sflag [#allocation6], %s318
        %s320 = sand.u32 %s80, 1
        %s321 = smul.addr %s320, 128
        %s322 = scalar_lea.vmem [#allocation5], %s321
        // Predicated region
        $region41: #{tpu_custom_call.1} parent=35 // pred_check
          %p323 = pneg %p93
        $region42: #{tpu_custom_call.1} parent=35 // pred_check_branch
          %325 = sbr.rel (%p323) target = $region44
        $region43: #{tpu_custom_call.1} parent=35 // pred_region
          %326 = dma.done %s319, 2048
        $region44: #{tpu_custom_call.1} parent=35 // pred_fallthru
          _
        %s327 = sand.u32 %s32, 1
        %s328 = scalar_lea.sflag [#allocation6], %s327
        %s329 = sand.u32 %s106, 1
        %s330 = smul.addr %s329, 128
        %s331 = scalar_lea.vmem [#allocation7], %s330
        // Predicated region
        $region45: #{tpu_custom_call.1} parent=35 // pred_check
          %p332 = pneg %p119
        $region46: #{tpu_custom_call.1} parent=35 // pred_check_branch
          %334 = sbr.rel (%p332) target = $region48
        $region47: #{tpu_custom_call.1} parent=35 // pred_region
          %335 = dma.done %s328, 2048
        $region48: #{tpu_custom_call.1} parent=35 // pred_fallthru
          _
        %s336 = sand.u32 %s134, 1
        %s337 = scalar_lea.sflag [#allocation9], %s336
        %s338 = sand.u32 %s134, 1
        %s339 = smul.addr %s338, 2
        %s340 = scalar_lea.vmem [#allocation8], %s339
        // Predicated region
        $region49: #{tpu_custom_call.1} parent=35 // pred_check
          %p341 = pneg %p147
        $region50: #{tpu_custom_call.1} parent=35 // pred_check_branch
          %343 = sbr.rel (%p341) target = $region52
        $region51: #{tpu_custom_call.1} parent=35 // pred_region
          %344 = dma.done %s337, 32
        $region52: #{tpu_custom_call.1} parent=35 // pred_fallthru
          _
        %s345 = sand.u32 %s54, 1
        %s346 = scalar_lea.sflag [#allocation3], %s345
        %s347 = sand.u32 %s54, 1
        %s348 = smul.addr %s347, 8
        %s349 = scalar_lea.vmem [#allocation2], %s348
        %p350 = pneg %p67
        %p351 = pneg %p64
        %s352 = sand.u32 %s32, 1
        %s353 = scalar_lea.sflag [#allocation6], %s352
        %s354 = sand.u32 %s80, 1
        %s355 = smul.addr %s354, 128
        %s356 = scalar_lea.vmem [#allocation5], %s355
        %p357 = pneg %p93
        %p358 = pneg %p90
        %s359 = sand.u32 %s32, 1
        %s360 = scalar_lea.sflag [#allocation6], %s359
        %s361 = sand.u32 %s106, 1
        %s362 = smul.addr %s361, 128
        %s363 = scalar_lea.vmem [#allocation7], %s362
        %p364 = pneg %p119
        %p365 = pneg %p116
        %s366 = sand.u32 %s134, 1
        %s367 = scalar_lea.sflag [#allocation9], %s366
        %s368 = sand.u32 %s134, 1
        %s369 = smul.addr %s368, 2
        %s370 = scalar_lea.vmem [#allocation8], %s369
        %p371 = pneg %p147
        %p372 = pneg %p144
        %p373 = pneg %p175
        %p374 = pneg %p172
        %s375 = sand.u32 %s162, 1
        %s376 = scalar_lea.sflag [#allocation4], %s375
        %s377 = sand.u32 %s162, 1
        %s378 = smul.addr %s377, 8
        %s379 = scalar_lea.vmem [#allocation10], %s378
        %p380 = pneg %p203
        %p381 = pneg %p200
        %s382 = sand.u32 %s190, 1
        %s383 = scalar_lea.sflag [#allocation12], %s382
        %s384 = sand.u32 %s190, 1
        %s385 = smul.addr %s384, 8
        %s386 = scalar_lea.vmem [#allocation11], %s385
        %v387 = vld [vmem:[%s313] sm:$0xff]
        %v388 = vmul.f32 %v387, 0.25
        %v389 = vld [vmem:[%s322] sm:$0xff]
        %v390 = vld [vmem:[%s322 + $0x8] sm:$0xff]
        %v391 = vld [vmem:[%s322 + $0x10] sm:$0xff]
        %v392 = vld [vmem:[%s322 + $0x18] sm:$0xff]
        %v393 = vld [vmem:[%s322 + $0x20] sm:$0xff]
        %v394 = vld [vmem:[%s322 + $0x28] sm:$0xff]
        %v395 = vld [vmem:[%s322 + $0x30] sm:$0xff]
        %v396 = vld [vmem:[%s322 + $0x38] sm:$0xff]
        %v397 = vld [vmem:[%s322 + $0x40] sm:$0xff]
        %v398 = vld [vmem:[%s322 + $0x48] sm:$0xff]
        %v399 = vld [vmem:[%s322 + $0x50] sm:$0xff]
        %v400 = vld [vmem:[%s322 + $0x58] sm:$0xff]
        %v401 = vld [vmem:[%s322 + $0x60] sm:$0xff]
        %v402 = vld [vmem:[%s322 + $0x68] sm:$0xff]
        %v403 = vld [vmem:[%s322 + $0x70] sm:$0xff]
        %v404 = vld [vmem:[%s322 + $0x78] sm:$0xff]
        %v405 = vld [vmem:[%s331] sm:$0xff]
        %v406 = vld [vmem:[%s331 + $0x8] sm:$0xff]
        %v407 = vld [vmem:[%s331 + $0x10] sm:$0xff]
        %v408 = vld [vmem:[%s331 + $0x18] sm:$0xff]
        %v409 = vld [vmem:[%s331 + $0x20] sm:$0xff]
        %v410 = vld [vmem:[%s331 + $0x28] sm:$0xff]
        %v411 = vld [vmem:[%s331 + $0x30] sm:$0xff]
        %v412 = vld [vmem:[%s331 + $0x38] sm:$0xff]
        %v413 = vld [vmem:[%s331 + $0x40] sm:$0xff]
        %v414 = vld [vmem:[%s331 + $0x48] sm:$0xff]
        %v415 = vld [vmem:[%s331 + $0x50] sm:$0xff]
        %v416 = vld [vmem:[%s331 + $0x58] sm:$0xff]
        %v417 = vld [vmem:[%s331 + $0x60] sm:$0xff]
        %v418 = vld [vmem:[%s331 + $0x68] sm:$0xff]
        %v419 = vld [vmem:[%s331 + $0x70] sm:$0xff]
        %v420 = vld [vmem:[%s331 + $0x78] sm:$0xff]
        %v421 = vld [vmem:[%s340] sm:$0x3]
        %v422 = vunpack.c.0.s8 %v421
        %v423 = vcvt.s32.f32 %v422
        %424 = vmatprep.subr.mxu0 0.0
        %425 = vmatpush1.xpose.msra.mxu0 %v404
        %426 = vmatprep.subr.mxu0 0.0
        %427 = vmatpush1.xpose.msra.mxu0 %v403
        %428 = vmatprep.subr.mxu0 0.0
        %429 = vmatpush1.xpose.msra.mxu0 %v402
        %430 = vmatprep.subr.mxu0 0.0
        %431 = vmatpush1.xpose.msra.mxu0 %v401
        %432 = vmatprep.subr.mxu0 0.0
        %433 = vmatpush1.xpose.msra.mxu0 %v400
        %434 = vmatprep.subr.mxu0 0.0
        %435 = vmatpush1.xpose.msra.mxu0 %v399
        %436 = vmatprep.subr.mxu0 0.0
        %437 = vmatpush1.xpose.msra.mxu0 %v398
        %438 = vmatprep.subr.mxu0 0.0
        %439 = vmatpush1.xpose.msra.mxu0 %v397
        %440 = vmatprep.subr.mxu0 0.0
        %441 = vmatpush1.xpose.msra.mxu0 %v396
        %442 = vmatprep.subr.mxu0 0.0
        %443 = vmatpush1.xpose.msra.mxu0 %v395
        %444 = vmatprep.subr.mxu0 0.0
        %445 = vmatpush1.xpose.msra.mxu0 %v394
        %446 = vmatprep.subr.mxu0 0.0
        %447 = vmatpush1.xpose.msra.mxu0 %v393
        %448 = vmatprep.subr.mxu0 0.0
        %449 = vmatpush1.xpose.msra.mxu0 %v392
        %450 = vmatprep.subr.mxu0 0.0
        %451 = vmatpush1.xpose.msra.mxu0 %v391
        %452 = vmatprep.subr.mxu0 0.0
        %453 = vmatpush1.xpose.msra.mxu0 %v390
        %454 = vmatprep.subr.mxu0 0.0
        %455 = vmatpush1.xpose.msra.mxu0 %v389
        %456 = vmatprep.subr.mxu0 0.0
        %457 = vmatpush2.xpose.msra.mxu0 0.0
        %458 = vmatprep.subr.mxu0 0.0
        %459 = vmatpush2.xpose.msra.mxu0 0.0
        %460 = vmatprep.subr.mxu0 0.0
        %461 = vmatpush2.xpose.msra.mxu0 0.0
        %462 = vmatprep.subr.mxu0 0.0
        %463 = vmatpush2.xpose.msra.mxu0 0.0
        %464 = vmatprep.subr.mxu0 0.0
        %465 = vmatpush2.xpose.msra.mxu0 0.0
        %466 = vmatprep.subr.mxu0 0.0
        %467 = vmatpush2.xpose.msra.mxu0 0.0
        %468 = vmatprep.subr.mxu0 0.0
        %469 = vmatpush2.xpose.msra.mxu0 0.0
        %470 = vmatprep.subr.mxu0 0.0
        %471 = vmatpush2.xpose.msra.mxu0 0.0
        %472 = vmatprep.subr.mxu0 0.0
        %473 = vmatpush2.xpose.msra.mxu0 0.0
        %474 = vmatprep.subr.mxu0 0.0
        %475 = vmatpush2.xpose.msra.mxu0 0.0
        %476 = vmatprep.subr.mxu0 0.0
        %477 = vmatpush2.xpose.msra.mxu0 0.0
        %478 = vmatprep.subr.mxu0 0.0
        %479 = vmatpush2.xpose.msra.mxu0 0.0
        %480 = vmatprep.subr.mxu0 0.0
        %481 = vmatpush2.xpose.msra.mxu0 0.0
        %482 = vmatprep.subr.mxu0 0.0
        %483 = vmatpush2.xpose.msra.mxu0 0.0
        %484 = vmatprep.subr.mxu0 0.0
        %485 = vmatpush2.xpose.msra.mxu0 0.0
        %486 = vmatprep.subr.mxu0 0.0
        %487 = vmatpush2.xpose.msra.mxu0 0.0
        %488 = vmatprep.mubr.f32.mxu0 0.0
        %489 = vmatmul.mubr.f32.gmra.mxu0 %v388
        %v490 = vpop.f32.mrf.mxu0
        %v491 = vadd.f32 0.0, %v490
        %v492 = vpop.f32.mrf.mxu0
        %493 = vdwg.mxu0
        %vm494 = vcmp.ne.f32.partialorder %v423, 0.0
        %v495 = vsel %vm494, -1e+09, %v491
        %v496 = vlaneseq
        %v497 = vand.u32 %v496, 127
        %vm498 = vcmp.ge.s32.totalorder %v497, 8
        %v499 = vsel %vm498, -inf, %v495
        %500 = vmax.xlane.f32.xlu0 %v499
        %v501 = vpop.xlane.xlu0 %500
        %v502 = vsub.f32 %v499, %v501
        %v503 = vmul.f32 %v502, 1.442695
        %v504 = vpow.pop %v503
        %505 = vadd.xlane.f32.xlu0 %v504
        %v506 = vpop.xlane.xlu0 %505
        %v507 = vrcp.pop %v506
        %v508 = vmul.f32 %v506, %v507
        %v509 = vsub.f32 2.0, %v508
        %v510 = vmul.f32 %v507, %v509
        %v511 = vmul.f32 %v504, %v510
        %512 = vmatprep.subr.mxu0 0.0
        %513 = vmatpush1.msra.mxu0 %v420
        %514 = vmatprep.subr.mxu0 0.0
        %515 = vmatpush1.msra.mxu0 %v419
        %516 = vmatprep.subr.mxu0 0.0
        %517 = vmatpush1.msra.mxu0 %v418
        %518 = vmatprep.subr.mxu0 0.0
        %519 = vmatpush1.msra.mxu0 %v417
        %520 = vmatprep.subr.mxu0 0.0
        %521 = vmatpush1.msra.mxu0 %v416
        %522 = vmatprep.subr.mxu0 0.0
        %523 = vmatpush1.msra.mxu0 %v415
        %524 = vmatprep.subr.mxu0 0.0
        %525 = vmatpush1.msra.mxu0 %v414
        %526 = vmatprep.subr.mxu0 0.0
        %527 = vmatpush1.msra.mxu0 %v413
        %528 = vmatprep.subr.mxu0 0.0
        %529 = vmatpush1.msra.mxu0 %v412
        %530 = vmatprep.subr.mxu0 0.0
        %531 = vmatpush1.msra.mxu0 %v411
        %532 = vmatprep.subr.mxu0 0.0
        %533 = vmatpush1.msra.mxu0 %v410
        %534 = vmatprep.subr.mxu0 0.0
        %535 = vmatpush1.msra.mxu0 %v409
        %536 = vmatprep.subr.mxu0 0.0
        %537 = vmatpush1.msra.mxu0 %v408
        %538 = vmatprep.subr.mxu0 0.0
        %539 = vmatpush1.msra.mxu0 %v407
        %540 = vmatprep.subr.mxu0 0.0
        %541 = vmatpush1.msra.mxu0 %v406
        %542 = vmatprep.subr.mxu0 0.0
        %543 = vmatpush1.msra.mxu0 %v405
        %544 = vmatprep.subr.mxu0 0.0
        %545 = vmatpush2.msra.mxu0 0.0
        %546 = vmatprep.subr.mxu0 0.0
        %547 = vmatpush2.msra.mxu0 0.0
        %548 = vmatprep.subr.mxu0 0.0
        %549 = vmatpush2.msra.mxu0 0.0
        %550 = vmatprep.subr.mxu0 0.0
        %551 = vmatpush2.msra.mxu0 0.0
        %552 = vmatprep.subr.mxu0 0.0
        %553 = vmatpush2.msra.mxu0 0.0
        %554 = vmatprep.subr.mxu0 0.0
        %555 = vmatpush2.msra.mxu0 0.0
        %556 = vmatprep.subr.mxu0 0.0
        %557 = vmatpush2.msra.mxu0 0.0
        %558 = vmatprep.subr.mxu0 0.0
        %559 = vmatpush2.msra.mxu0 0.0
        %560 = vmatprep.subr.mxu0 0.0
        %561 = vmatpush2.msra.mxu0 0.0
        %562 = vmatprep.subr.mxu0 0.0
        %563 = vmatpush2.msra.mxu0 0.0
        %564 = vmatprep.subr.mxu0 0.0
        %565 = vmatpush2.msra.mxu0 0.0
        %566 = vmatprep.subr.mxu0 0.0
        %567 = vmatpush2.msra.mxu0 0.0
        %568 = vmatprep.subr.mxu0 0.0
        %569 = vmatpush2.msra.mxu0 0.0
        %570 = vmatprep.subr.mxu0 0.0
        %571 = vmatpush2.msra.mxu0 0.0
        %572 = vmatprep.subr.mxu0 0.0
        %573 = vmatpush2.msra.mxu0 0.0
        %574 = vmatprep.subr.mxu0 0.0
        %575 = vmatpush2.msra.mxu0 0.0
        %576 = vmatprep.mubr.f32.mxu0 0.0
        %577 = vmatmul.mubr.f32.gmra.mxu0 %v511
        %v578 = vpop.f32.mrf.mxu0
        %v579 = vadd.f32 0.0, %v578
        %v580 = vpop.f32.mrf.mxu0
        %581 = vdwg.mxu0
        %582 = vst [vmem:[%s386] sm:$0xff] %v511
        %583 = vst [vmem:[%s379] sm:$0xff] %v579
        %s584 = sand.u32 %s162, 1
        %s585 = scalar_lea.sflag [#allocation4], %s584
        %s586 = sand.u32 %s162, 1
        %s587 = smul.addr %s586, 8
        %s588 = scalar_lea.vmem [#allocation10], %s587
        %s589 = sand.u32 %s190, 1
        %s590 = scalar_lea.sflag [#allocation12], %s589
        %s591 = sand.u32 %s190, 1
        %s592 = smul.addr %s591, 8
        %s593 = scalar_lea.vmem [#allocation11], %s592
        // Predicated region
        $region53: #{tpu_custom_call.1} parent=35 // pred_check
          %p594 = pneg %p172
        $region54: #{tpu_custom_call.1} parent=35 // pred_check_branch
          %596 = sbr.rel (%p594) target = $region56
        $region55: #{tpu_custom_call.1} parent=35 // pred_region
          %s598 = ssub.s32 128, 128
          %599 = vsyncadd %s585, %s598
          %s600 = sadd.s32 %s37, %s36
          %s601 = smul.addr %s600, 128
          %s602 = scalar_lea.hbm %s4, %s601
          %s604 = sshll.u32 %s588, 4
          %s605 = int_to_ptr.vmem [resolvable:$true] %s604
          %607 = dma.vmem_to_hbm [thread:$0]  %s605, 128, %s602, %s585
        $region56: #{tpu_custom_call.1} parent=35 // pred_fallthru
          _
        // Predicated region
        $region57: #{tpu_custom_call.1} parent=35 // pred_check
          %p608 = pneg %p200
        $region58: #{tpu_custom_call.1} parent=35 // pred_check_branch
          %610 = sbr.rel (%p608) target = $region60
        $region59: #{tpu_custom_call.1} parent=35 // pred_region
          %s612 = ssub.s32 128, 128
          %613 = vsyncadd %s590, %s612
          %s614 = sadd.s32 %s37, %s36
          %s615 = smul.addr %s614, 128
          %s616 = scalar_lea.hbm %s5, %s615
          %s618 = sshll.u32 %s593, 4
          %s619 = int_to_ptr.vmem [resolvable:$true] %s618
          %621 = dma.vmem_to_hbm [thread:$0]  %s619, 128, %s616, %s590
        $region60: #{tpu_custom_call.1} parent=35 // pred_fallthru
          _
      $region36: #{tpu_custom_call.1} parent=5 // pred_fallthru
        _
      %p622 = scmp.le.s32.totalorder 2, %s27
      // Predicated region
      $region61: #{tpu_custom_call.1} parent=5 // pred_check
        %p623 = pneg %p622
      $region62: #{tpu_custom_call.1} parent=5 // pred_check_branch
        %625 = sbr.rel (%p623) target = $region64
      $region63: #{tpu_custom_call.1} parent=5 // pred_region
        %s626 = ssub.s32 %s27, 2
        // Predicated region
        $region65: #{tpu_custom_call.1} parent=63 // pred_check
          %p627 = pneg %p178
        $region66: #{tpu_custom_call.1} parent=63 // pred_check_branch
          %629 = sbr.rel (%p627) target = $region68
        $region67: #{tpu_custom_call.1} parent=63 // pred_region
          %s630 = sand.u32 %s163, 1
          %s631 = scalar_lea.sflag [#allocation4], %s630
          %s632 = sand.u32 %s163, 1
          %s633 = smul.addr %s632, 8
          %s634 = scalar_lea.vmem [#allocation10], %s633
          %635 = dma.done %s631, 128
        $region68: #{tpu_custom_call.1} parent=63 // pred_fallthru
          _
        // Predicated region
        $region69: #{tpu_custom_call.1} parent=63 // pred_check
          %p636 = pneg %p206
        $region70: #{tpu_custom_call.1} parent=63 // pred_check_branch
          %638 = sbr.rel (%p636) target = $region72
        $region71: #{tpu_custom_call.1} parent=63 // pred_region
          %s639 = sand.u32 %s191, 1
          %s640 = scalar_lea.sflag [#allocation12], %s639
          %s641 = sand.u32 %s191, 1
          %s642 = smul.addr %s641, 8
          %s643 = scalar_lea.vmem [#allocation11], %s642
          %644 = dma.done %s640, 128
        $region72: #{tpu_custom_call.1} parent=63 // pred_fallthru
          _
      $region64: #{tpu_custom_call.1} parent=5 // pred_fallthru
        _
    $region6: #{tpu_custom_call.1} parent=1 // loop_footer
      %s31 = sadd.s32 1, %s27
    $region7: #{tpu_custom_call.1} parent=1 // loop_footer_branch
      %26 = sbr.rel target = $region3
    $region8: #{tpu_custom_call.1} parent=1 // loop_exit
      _
    %645 = vsyncpa [#allocation3], 1
    %s646 = scalar_lea.sflag [#allocation3], 1
    %647 = vsyncpa %s646, 1
    %648 = vsyncpa [#allocation6], 1
    %s649 = scalar_lea.sflag [#allocation6], 1
    %650 = vsyncpa %s649, 1
    %651 = vsyncpa [#allocation9], 1
    %s652 = scalar_lea.sflag [#allocation9], 1
    %653 = vsyncpa %s652, 1
    %654 = vsyncpa [#allocation4], 1
    %s655 = scalar_lea.sflag [#allocation4], 1
    %656 = vsyncpa %s655, 1
    %657 = vsyncpa [#allocation12], 1
    %s658 = scalar_lea.sflag [#allocation12], 1
    %659 = vsyncpa %s658, 1

</llo_original>
